<compile_context>
chip_gen: v7x
topology: tpu7x:2x2x1
jax: 0.10.0
libtpu: 0.0.40
codegen_flags: <defaults>
</compile_context>

<pallas_src>
import functools

import jax
import jax.numpy as jnp
from jax.experimental import pallas as pl
from jax.experimental.pallas import tpu as pltpu


# ---------------------------------------------------------------------------
# Fused kernel: three MXU matmuls + biases + fused tanh, all in VMEM.
# ---------------------------------------------------------------------------
def _fused_dconv_kernel(x_ref, w1_ref, b1_ref, w2_ref, b2_ref, w3_ref, b3_ref,
                        o_ref):
    h = jnp.dot(x_ref[...], w1_ref[...], preferred_element_type=jnp.float32)
    h = jnp.tanh(h + b1_ref[...])                       # (TM, 64)
    h = jnp.dot(h, w2_ref[...], preferred_element_type=jnp.float32)
    h = jnp.tanh(h + b2_ref[...])                       # (TM, 128)
    h = jnp.dot(h, w3_ref[...], preferred_element_type=jnp.float32)
    o_ref[...] = (h + b3_ref[...]).astype(o_ref.dtype)  # (TM, 128) NCHW-flat


# ---------------------------------------------------------------------------
# ONE-TIME packing of the PyTorch ConvTranspose2d parameters into the three
# dense matmul weights + broadcast biases used by the fused kernel.
# Call this once per parameter set and reuse the result for every forward.
#
# Intermediate row layouts (per sample):
#   after L1: index = (kh*2 + kw)*16 + co                (64 values)
#   after L2: index = ((2h+kh)*4 + (2w+kw))*8 + co       (128 values, HWC 4x4x8)
#   after L3: index = co*64 + Y*8 + X                    (128 values, NCHW-flat 2x8x8)
# ---------------------------------------------------------------------------
def pack_params(params):
    (w1, b1), (w2, b2), (w3, b3) = params
    in_dim = w1.shape[0]

    # Layer 1: cols ordered (kh, kw, co)
    W1 = jnp.transpose(w1, (0, 2, 3, 1)).reshape(in_dim, 64)
    B1 = jnp.tile(b1, 4).reshape(1, 64)

    # Layer 2: block-diagonal in the (h, w) input location.
    # rows = (h, w, ci) -> 2*2*16 = 64 ; cols = (h, kh, w, kw, co) -> 128
    eye2 = jnp.eye(2, dtype=w2.dtype)
    W2 = jnp.einsum('ab,cd,iokl->acibkdlo', eye2, eye2, w2).reshape(64, 128)
    B2 = jnp.tile(b2, 16).reshape(1, 128)

    # Layer 3: block-diagonal in the (H, W) input location, output permuted to
    # NCHW-flat order so the kernel writes the final layout directly.
    # rows = (H, W, c) -> 4*4*8 = 128 ; cols = (co, H, kh, W, kw) -> 128
    eye4 = jnp.eye(4, dtype=w3.dtype)
    W3 = jnp.einsum('ab,cd,iokl->aciobkdl', eye4, eye4, w3).reshape(128, 128)
    B3 = jnp.repeat(b3, 64).reshape(1, 128)

    return W1, B1, W2, B2, W3, B3


def _round_up(a, b):
    return (a + b - 1) // b * b


def _choose_grid(n, max_tile):
    """Pick (tile_rows, grid_steps) for the batch axis.

    - tile_rows is a multiple of 8 (sublane) and <= max_tile.
    - grid_steps is kept even (>=2) when there is enough work so the two
      TensorCores on v7x get balanced shards (harmless on 1-TC v5e/v6e).
    - The last block may be ragged; Pallas masks its reads/writes, and every
      row is independent, so the garbage rows are discarded safely.
    """
    steps = pl.cdiv(n, max_tile)
    if steps == 1 and n >= 2048:
        steps = 2                       # split one big tile across both TCs
    elif steps > 1 and steps % 2:
        steps += 1                      # even step count for megacore balance
    tm = _round_up(max(pl.cdiv(n, steps), 8), 8)
    return tm, pl.cdiv(n, tm)


@functools.partial(jax.jit, static_argnames=("max_tile",))
def diffeo_mnist_dconv_forward(x, packed_params, *, max_tile=4096):
    """x: (N, in_dim) float32, packed_params: output of pack_params().
    Returns (N, 64, 2), matching the PyTorch module."""
    W1, B1, W2, B2, W3, B3 = packed_params
    n, in_dim = x.shape
    tm, steps = _choose_grid(n, max_tile)

    out = pl.pallas_call(
        _fused_dconv_kernel,
        out_shape=jax.ShapeDtypeStruct((n, 128), jnp.float32),
        grid=(steps,),
        in_specs=[
            pl.BlockSpec((tm, in_dim), lambda i: (i, 0)),   # x tile (ragged last)
            pl.BlockSpec((in_dim, 64), lambda i: (0, 0)),   # W1 (grid-invariant)
            pl.BlockSpec((1, 64), lambda i: (0, 0)),        # b1
            pl.BlockSpec((64, 128), lambda i: (0, 0)),      # W2 (grid-invariant)
            pl.BlockSpec((1, 128), lambda i: (0, 0)),       # b2
            pl.BlockSpec((128, 128), lambda i: (0, 0)),     # W3 (grid-invariant)
            pl.BlockSpec((1, 128), lambda i: (0, 0)),       # b3
        ],
        out_specs=pl.BlockSpec((tm, 128), lambda i: (i, 0)),
        compiler_params=pltpu.CompilerParams(
            dimension_semantics=("parallel",),              # shard batch over TCs
            vmem_limit_bytes=32 * 1024 * 1024,              # room for tm up to ~4096
        ),
    )(x, W1, B1, W2, B2, W3, B3)

    # Kernel already wrote NCHW-flat order; .view(N, 64, 2) is a free reshape.
    return out.reshape(n, 8 * 8, 2)


# ---------------------------------------------------------------------------
# Pure-JAX reference (direct ConvTranspose2d definition) for verification.
# ---------------------------------------------------------------------------
def _ref_deconv(x, w, b):
    y = jnp.einsum('nchw,cdkl->ndhkwl', x, w)
    N, Cout, H, _, W, _ = y.shape
    return y.reshape(N, Cout, 2 * H, 2 * W) + b[None, :, None, None]


def ref_forward(x, params):
    (w1, b1), (w2, b2), (w3, b3) = params
    h = x[:, :, None, None]
    h = jnp.tanh(_ref_deconv(h, w1, b1))
    h = jnp.tanh(_ref_deconv(h, w2, b2))
    h = _ref_deconv(h, w3, b3)
    return h.reshape(x.shape[0], 8 * 8, 2)


def init_params(key, in_dim=10):
    """Deterministic synthetic parameters with PyTorch ConvTranspose2d shapes:
       weight: (in_channels, out_channels, kH, kW); bias: (out_channels,)."""
    ks = jax.random.split(key, 6)
    w1 = 0.3 * jax.random.normal(ks[0], (in_dim, 16, 2, 2), jnp.float32)
    b1 = 0.1 * jax.random.normal(ks[1], (16,), jnp.float32)
    w2 = 0.3 * jax.random.normal(ks[2], (16, 8, 2, 2), jnp.float32)
    b2 = 0.1 * jax.random.normal(ks[3], (8,), jnp.float32)
    w3 = 0.3 * jax.random.normal(ks[4], (8, 2, 2, 2), jnp.float32)
    b3 = 0.1 * jax.random.normal(ks[5], (2,), jnp.float32)
    return ((w1, b1), (w2, b2), (w3, b3))


if __name__ == "__main__":
    key = jax.random.PRNGKey(0)
    k_p, k_x1, k_x2 = jax.random.split(key, 3)
    in_dim = 10
    params = init_params(k_p, in_dim)

    # One-time packing (hoisted out of the per-call forward path).
    packed = jax.tree_util.tree_map(jax.block_until_ready, pack_params(params))

    # Small batch (module-sized example): N=2
    x_small = jax.random.normal(k_x1, (2, in_dim), jnp.float32)
    out_small = jax.block_until_ready(diffeo_mnist_dconv_forward(x_small, packed))
    ref_small = jax.block_until_ready(ref_forward(x_small, params))
    assert out_small.shape == (2, 64, 2), out_small.shape
    assert jnp.allclose(out_small, ref_small, atol=1e-4, rtol=1e-4), \
        float(jnp.max(jnp.abs(out_small - ref_small)))

    # Larger, non-divisible batch to exercise the multi-step ragged grid path
    # (no wrapper-side padding or slicing).
    x_big = jax.random.normal(k_x2, (2050, in_dim), jnp.float32)
    out_big = jax.block_until_ready(diffeo_mnist_dconv_forward(x_big, packed))
    ref_big = jax.block_until_ready(ref_forward(x_big, params))
    assert out_big.shape == (2050, 64, 2), out_big.shape
    assert jnp.allclose(out_big, ref_big, atol=1e-4, rtol=1e-4), \
        float(jnp.max(jnp.abs(out_big - ref_big)))

    print("KERNEL_OK")
</pallas_src>

<mosaic_0001>
module attributes {stable_mosaic.version = 11 : i64} {
  func.func @_fused_dconv_kernel(%arg0: i32, %arg1: memref<8x10xf32, #tpu.memory_space<vmem>>, %arg2: memref<10x64xf32, #tpu.memory_space<vmem>>, %arg3: memref<1x64xf32, #tpu.memory_space<vmem>>, %arg4: memref<64x128xf32, #tpu.memory_space<vmem>>, %arg5: memref<1x128xf32, #tpu.memory_space<vmem>>, %arg6: memref<128x128xf32, #tpu.memory_space<vmem>>, %arg7: memref<1x128xf32, #tpu.memory_space<vmem>>, %arg8: memref<8x128xf32, #tpu.memory_space<vmem>>) attributes {dimension_semantics = [#tpu.dimension_semantics<parallel>], iteration_bounds = array<i64: 1>, scalar_prefetch = 0 : i64, scratch_operands = 0 : i64, tpu.core_type = #tpu.core_type<tc>, window_params = [{transform_indices = @transform_0, window_bounds = array<i64: 8, 10>}, {pipeline_mode = #tpu.pipeline_mode<synchronous>, transform_indices = @transform_1, window_bounds = array<i64: 10, 64>}, {pipeline_mode = #tpu.pipeline_mode<synchronous>, transform_indices = @transform_2, window_bounds = array<i64: 1, 64>}, {pipeline_mode = #tpu.pipeline_mode<synchronous>, transform_indices = @transform_3, window_bounds = array<i64: 64, 128>}, {pipeline_mode = #tpu.pipeline_mode<synchronous>, transform_indices = @transform_4, window_bounds = array<i64: 1, 128>}, {pipeline_mode = #tpu.pipeline_mode<synchronous>, transform_indices = @transform_5, window_bounds = array<i64: 128, 128>}, {pipeline_mode = #tpu.pipeline_mode<synchronous>, transform_indices = @transform_6, window_bounds = array<i64: 1, 128>}, {transform_indices = @transform_7, window_bounds = array<i64: 8, 128>}]} {
    %c0 = arith.constant 0 : index
    %c0_0 = arith.constant 0 : index
    %0 = vector.load %arg1[%c0, %c0_0] : memref<8x10xf32, #tpu.memory_space<vmem>>, vector<8x10xf32>
    %c0_1 = arith.constant 0 : index
    %c0_2 = arith.constant 0 : index
    %1 = vector.load %arg2[%c0_1, %c0_2] : memref<10x64xf32, #tpu.memory_space<vmem>>, vector<10x64xf32>
    %cst = arith.constant dense<0.000000e+00> : vector<8x64xf32>
    %2 = tpu.matmul %0, %1, %cst {dimension_numbers = #tpu.dot_dimension_numbers<[1], [0], [0], [1], [0, 0, 1, 1], [], []>} : vector<8x10xf32>, vector<10x64xf32>, vector<8x64xf32> -> vector<8x64xf32>
    %c0_3 = arith.constant 0 : index
    %c0_4 = arith.constant 0 : index
    %3 = vector.load %arg3[%c0_3, %c0_4] : memref<1x64xf32, #tpu.memory_space<vmem>>, vector<1x64xf32>
    %4 = vector.broadcast %3 : vector<1x64xf32> to vector<8x64xf32>
    %5 = arith.addf %2, %4 : vector<8x64xf32>
    %6 = math.tanh %5 : vector<8x64xf32>
    %c0_5 = arith.constant 0 : index
    %c0_6 = arith.constant 0 : index
    %7 = vector.load %arg4[%c0_5, %c0_6] : memref<64x128xf32, #tpu.memory_space<vmem>>, vector<64x128xf32>
    %cst_7 = arith.constant dense<0.000000e+00> : vector<8x128xf32>
    %8 = tpu.matmul %6, %7, %cst_7 {dimension_numbers = #tpu.dot_dimension_numbers<[1], [0], [0], [1], [0, 0, 1, 1], [], []>} : vector<8x64xf32>, vector<64x128xf32>, vector<8x128xf32> -> vector<8x128xf32>
    %c0_8 = arith.constant 0 : index
    %c0_9 = arith.constant 0 : index
    %9 = vector.load %arg5[%c0_8, %c0_9] : memref<1x128xf32, #tpu.memory_space<vmem>>, vector<1x128xf32>
    %10 = vector.broadcast %9 : vector<1x128xf32> to vector<8x128xf32>
    %11 = arith.addf %8, %10 : vector<8x128xf32>
    %12 = math.tanh %11 : vector<8x128xf32>
    %c0_10 = arith.constant 0 : index
    %c0_11 = arith.constant 0 : index
    %13 = vector.load %arg6[%c0_10, %c0_11] : memref<128x128xf32, #tpu.memory_space<vmem>>, vector<128x128xf32>
    %cst_12 = arith.constant dense<0.000000e+00> : vector<8x128xf32>
    %14 = tpu.matmul %12, %13, %cst_12 {dimension_numbers = #tpu.dot_dimension_numbers<[1], [0], [0], [1], [0, 0, 1, 1], [], []>} : vector<8x128xf32>, vector<128x128xf32>, vector<8x128xf32> -> vector<8x128xf32>
    %c0_13 = arith.constant 0 : index
    %c0_14 = arith.constant 0 : index
    %15 = vector.load %arg7[%c0_13, %c0_14] : memref<1x128xf32, #tpu.memory_space<vmem>>, vector<1x128xf32>
    %16 = vector.broadcast %15 : vector<1x128xf32> to vector<8x128xf32>
    %17 = arith.addf %14, %16 : vector<8x128xf32>
    %c0_15 = arith.constant 0 : index
    %c0_16 = arith.constant 0 : index
    %18 = vector.load %arg8[%c0_15, %c0_16] : memref<8x128xf32, #tpu.memory_space<vmem>>, vector<8x128xf32>
    tpu.vector_store %arg8[%c0_15, %c0_16], %17 {strides = array<i32>} : memref<8x128xf32, #tpu.memory_space<vmem>>, vector<8x128xf32>,
    return
  }
  func.func @transform_0(%arg0: i32) -> (i32, i32) {
    %c0_i32 = arith.constant 0 : i32
    %c0_i32_0 = arith.constant 0 : i32
    return %arg0, %c0_i32 : i32, i32
  }
  func.func @transform_1(%arg0: i32) -> (i32, i32) {
    %c0_i32 = arith.constant 0 : i32
    %c0_i32_0 = arith.constant 0 : i32
    %c0_i32_1 = arith.constant 0 : i32
    return %c0_i32, %c0_i32_0 : i32, i32
  }
  func.func @transform_2(%arg0: i32) -> (i32, i32) {
    %c0_i32 = arith.constant 0 : i32
    %c0_i32_0 = arith.constant 0 : i32
    %c0_i32_1 = arith.constant 0 : i32
    return %c0_i32, %c0_i32_0 : i32, i32
  }
  func.func @transform_3(%arg0: i32) -> (i32, i32) {
    %c0_i32 = arith.constant 0 : i32
    %c0_i32_0 = arith.constant 0 : i32
    %c0_i32_1 = arith.constant 0 : i32
    return %c0_i32, %c0_i32_0 : i32, i32
  }
  func.func @transform_4(%arg0: i32) -> (i32, i32) {
    %c0_i32 = arith.constant 0 : i32
    %c0_i32_0 = arith.constant 0 : i32
    %c0_i32_1 = arith.constant 0 : i32
    return %c0_i32, %c0_i32_0 : i32, i32
  }
  func.func @transform_5(%arg0: i32) -> (i32, i32) {
    %c0_i32 = arith.constant 0 : i32
    %c0_i32_0 = arith.constant 0 : i32
    %c0_i32_1 = arith.constant 0 : i32
    return %c0_i32, %c0_i32_0 : i32, i32
  }
  func.func @transform_6(%arg0: i32) -> (i32, i32) {
    %c0_i32 = arith.constant 0 : i32
    %c0_i32_0 = arith.constant 0 : i32
    %c0_i32_1 = arith.constant 0 : i32
    return %c0_i32, %c0_i32_0 : i32, i32
  }
  func.func @transform_7(%arg0: i32) -> (i32, i32) {
    %c0_i32 = arith.constant 0 : i32
    %c0_i32_0 = arith.constant 0 : i32
    return %arg0, %c0_i32 : i32, i32
  }
}

</mosaic_0001>

<llo_original>
// kernel: diffeo_mnist_dconv_forward.1
$region0: #{diffeo_mnist_dconv_forward.1}
  #allocation0 [shape = 'u32[]', space=smem, size = 0x4, offset = 0x4, fixed_abs, tag = 'smem constant byte address 0x4 - core index']
  #allocation1 [shape = 'u32[144,128]{1,0:T(1,128)}', space=vmem, size = 0x12000, scoped, tag = 'internal scratch']
  %s0 = inlined_call_operand.hbm [shape: f32[2,10], index: 0, kind: input, shape index: {}]
  %s1 = inlined_call_operand.hbm [shape: f32[10,64], index: 1, kind: input, shape index: {}]
  %s2 = inlined_call_operand.vmem [shape: f32[1,64], index: 2, kind: input, shape index: {}]
  %s3 = inlined_call_operand.hbm [shape: f32[64,128], index: 3, kind: input, shape index: {}]
  %s4 = inlined_call_operand.vmem [shape: f32[1,128], index: 4, kind: input, shape index: {}]
  %s5 = inlined_call_operand.hbm [shape: f32[128,128], index: 5, kind: input, shape index: {}]
  %s6 = inlined_call_operand.vmem [shape: f32[1,128], index: 6, kind: input, shape index: {}]
  %s7 = inlined_call_operand.vmem [shape: f32[2,128], index: 7, kind: output, shape index: {}]
  %s8 = sld [smem:[#allocation0]]
  $region84: #{diffeo_mnist_dconv_forward.1} parent=0
    _
  %s10 = ssub.s32 1, %s8
  %s11 = scalar_select 0, %s10, %s8
  $region1: #{diffeo_mnist_dconv_forward.1} parent=0
    #allocation2 [shape = 'u8[4096]{0}', space=vmem, size = 0x1000, scoped, tag = 'input window, operand 0, single buffered']
    #allocation3 [shape = 's32[1]{0}', space=sflag, size = 0x4, scoped, tag = 'scoped memory for diffeo_mnist_dconv_forward.1']
    #allocation4 [shape = 'u8[8192]{0}', space=vmem, size = 0x2000, scoped, tag = 'input window, operand 1, single buffered']
    #allocation5 [shape = 's32[1]{0}', space=sflag, size = 0x4, scoped, tag = 'scoped memory for diffeo_mnist_dconv_forward.1']
    #allocation6 [shape = 'u8[32768]{0}', space=vmem, size = 0x8000, scoped, tag = 'input window, operand 3, single buffered']
    #allocation7 [shape = 'u8[65536]{0}', space=vmem, size = 0x10000, scoped, tag = 'input window, operand 5, single buffered']
    #allocation8 [shape = 's32[1]{0}', space=sflag, size = 0x4, scoped, tag = 'scoped memory for diffeo_mnist_dconv_forward.1']
    #allocation9 [shape = 'u8[4096]{0}', space=vmem, size = 0x1000, scoped, tag = 'output window, operand 0, single buffered']
    %12 = vsyncpa [#allocation3], 0
    %13 = vsyncpa [#allocation5], 0
    %14 = vsyncpa [#allocation8], 0
    // Predicated region
    $region2: #{diffeo_mnist_dconv_forward.1} parent=1 // pred_check
      _
    $region3: #{diffeo_mnist_dconv_forward.1} parent=1 // pred_check_branch
      %16 = sbr.rel (0) target = $region5
    $region4: #{diffeo_mnist_dconv_forward.1} parent=1 // pred_region
      %s18 = ssub.s32 128, 32
      %19 = vsyncadd [#allocation3], %s18
      %s20 = sshll.u32 [#allocation2], 4
      %s21 = int_to_ptr.vmem [resolvable:$true] %s20
      %26 = dma.hbm_to_vmem [thread:$0]  %s0, 32, %s21, [#allocation3], 32, 32, 2
    $region5: #{diffeo_mnist_dconv_forward.1} parent=1 // pred_fallthru
      _
    // Predicated region
    $region6: #{diffeo_mnist_dconv_forward.1} parent=1 // pred_check
      _
    $region7: #{diffeo_mnist_dconv_forward.1} parent=1 // pred_check_branch
      %28 = sbr.rel (0) target = $region9
    $region8: #{diffeo_mnist_dconv_forward.1} parent=1 // pred_region
      %s30 = ssub.s32 256, 256
      %31 = vsyncadd [#allocation5], %s30
      %s32 = sshll.u32 [#allocation4], 4
      %s33 = int_to_ptr.vmem [resolvable:$true] %s32
      %38 = dma.hbm_to_vmem [thread:$0]  %s1, 256, %s33, [#allocation5], 128, 128, 8
    $region9: #{diffeo_mnist_dconv_forward.1} parent=1 // pred_fallthru
      _
    // Predicated region
    $region10: #{diffeo_mnist_dconv_forward.1} parent=1 // pred_check
      _
    $region11: #{diffeo_mnist_dconv_forward.1} parent=1 // pred_check_branch
      %40 = sbr.rel (0) target = $region13
    $region12: #{diffeo_mnist_dconv_forward.1} parent=1 // pred_region
      _
    $region13: #{diffeo_mnist_dconv_forward.1} parent=1 // pred_fallthru
      _
    // Predicated region
    $region14: #{diffeo_mnist_dconv_forward.1} parent=1 // pred_check
      _
    $region15: #{diffeo_mnist_dconv_forward.1} parent=1 // pred_check_branch
      %42 = sbr.rel (0) target = $region17
    $region16: #{diffeo_mnist_dconv_forward.1} parent=1 // pred_region
      %s44 = ssub.s32 1024, 1024
      %45 = vsyncadd [#allocation5], %s44
      %s46 = sshll.u32 [#allocation6], 4
      %s47 = int_to_ptr.vmem [resolvable:$true] %s46
      %52 = dma.hbm_to_vmem [thread:$0]  %s3, 1024, %s47, [#allocation5], 128, 128, 8
    $region17: #{diffeo_mnist_dconv_forward.1} parent=1 // pred_fallthru
      _
    // Predicated region
    $region18: #{diffeo_mnist_dconv_forward.1} parent=1 // pred_check
      _
    $region19: #{diffeo_mnist_dconv_forward.1} parent=1 // pred_check_branch
      %54 = sbr.rel (0) target = $region21
    $region20: #{diffeo_mnist_dconv_forward.1} parent=1 // pred_region
      _
    $region21: #{diffeo_mnist_dconv_forward.1} parent=1 // pred_fallthru
      _
    // Predicated region
    $region22: #{diffeo_mnist_dconv_forward.1} parent=1 // pred_check
      _
    $region23: #{diffeo_mnist_dconv_forward.1} parent=1 // pred_check_branch
      %56 = sbr.rel (0) target = $region25
    $region24: #{diffeo_mnist_dconv_forward.1} parent=1 // pred_region
      %s58 = ssub.s32 2048, 2048
      %59 = vsyncadd [#allocation8], %s58
      %s60 = sshll.u32 [#allocation7], 4
      %s61 = int_to_ptr.vmem [resolvable:$true] %s60
      %66 = dma.hbm_to_vmem [thread:$0]  %s5, 2048, %s61, [#allocation8], 128, 128, 8
    $region25: #{diffeo_mnist_dconv_forward.1} parent=1 // pred_fallthru
      _
    // Predicated region
    $region26: #{diffeo_mnist_dconv_forward.1} parent=1 // pred_check
      _
    $region27: #{diffeo_mnist_dconv_forward.1} parent=1 // pred_check_branch
      %68 = sbr.rel (0) target = $region29
    $region28: #{diffeo_mnist_dconv_forward.1} parent=1 // pred_region
      _
    $region29: #{diffeo_mnist_dconv_forward.1} parent=1 // pred_fallthru
      _
    // Predicated region
    $region30: #{diffeo_mnist_dconv_forward.1} parent=1 // pred_check
      _
    $region31: #{diffeo_mnist_dconv_forward.1} parent=1 // pred_check_branch
      %70 = sbr.rel (0) target = $region33
    $region32: #{diffeo_mnist_dconv_forward.1} parent=1 // pred_region
      %71 = dma.done [#allocation3], 128
    $region33: #{diffeo_mnist_dconv_forward.1} parent=1 // pred_fallthru
      _
    // Predicated region
    $region34: #{diffeo_mnist_dconv_forward.1} parent=1 // pred_check
      _
    $region35: #{diffeo_mnist_dconv_forward.1} parent=1 // pred_check_branch
      %73 = sbr.rel (0) target = $region37
    $region36: #{diffeo_mnist_dconv_forward.1} parent=1 // pred_region
      %74 = dma.done [#allocation5], 256
    $region37: #{diffeo_mnist_dconv_forward.1} parent=1 // pred_fallthru
      _
    // Predicated region
    $region38: #{diffeo_mnist_dconv_forward.1} parent=1 // pred_check
      _
    $region39: #{diffeo_mnist_dconv_forward.1} parent=1 // pred_check_branch
      %76 = sbr.rel (0) target = $region41
    $region40: #{diffeo_mnist_dconv_forward.1} parent=1 // pred_region
      %77 = dma.done [#allocation5], 1024
    $region41: #{diffeo_mnist_dconv_forward.1} parent=1 // pred_fallthru
      _
    // Predicated region
    $region42: #{diffeo_mnist_dconv_forward.1} parent=1 // pred_check
      _
    $region43: #{diffeo_mnist_dconv_forward.1} parent=1 // pred_check_branch
      %79 = sbr.rel (0) target = $region45
    $region44: #{diffeo_mnist_dconv_forward.1} parent=1 // pred_region
      %80 = dma.done [#allocation8], 2048
    $region45: #{diffeo_mnist_dconv_forward.1} parent=1 // pred_fallthru
      _
    %v81 = vld [vmem:[#allocation2] sm:$0xff]
    %v82 = vld [vmem:[#allocation4] sm:$0xff]
    %v83 = vld [vmem:[#allocation4 + $0x8] sm:$0x3]
    %v84 = vld [vmem:[%s2] sm:$0x1]
    %v86 = vlaneseq
    %v87 = vshrl.u32 %v86, 7
    %v88 = vsub.s32 0, %v87
    %v89 = vrot.slane %v84, %v88
    %vm91 = vcmask 80896
    %v93 = vsel %vm91, %v81, 0
    %vm95 = vcmask 1041408
    %v97 = vsel %vm95, %v83, 0
    %99 = vmatprep.subr.mxu0 0.0
    %100 = vmatpush1.msra.mxu0 %v82
    %101 = vmatprep.subr.mxu0 0.0
    %102 = vmatpush1.msra.mxu0 %v97
    %103 = vmatprep.subr.mxu0 0.0
    %104 = vmatpush1.msra.mxu0 0.0
    %105 = vmatprep.subr.mxu0 0.0
    %106 = vmatpush1.msra.mxu0 0.0
    %107 = vmatprep.subr.mxu0 0.0
    %108 = vmatpush1.msra.mxu0 0.0
    %109 = vmatprep.subr.mxu0 0.0
    %110 = vmatpush1.msra.mxu0 0.0
    %111 = vmatprep.subr.mxu0 0.0
    %112 = vmatpush1.msra.mxu0 0.0
    %113 = vmatprep.subr.mxu0 0.0
    %114 = vmatpush1.msra.mxu0 0.0
    %115 = vmatprep.subr.mxu0 0.0
    %116 = vmatpush1.msra.mxu0 0.0
    %117 = vmatprep.subr.mxu0 0.0
    %118 = vmatpush1.msra.mxu0 0.0
    %119 = vmatprep.subr.mxu0 0.0
    %120 = vmatpush1.msra.mxu0 0.0
    %121 = vmatprep.subr.mxu0 0.0
    %122 = vmatpush1.msra.mxu0 0.0
    %123 = vmatprep.subr.mxu0 0.0
    %124 = vmatpush1.msra.mxu0 0.0
    %125 = vmatprep.subr.mxu0 0.0
    %126 = vmatpush1.msra.mxu0 0.0
    %127 = vmatprep.subr.mxu0 0.0
    %128 = vmatpush1.msra.mxu0 0.0
    %129 = vmatprep.subr.mxu0 0.0
    %130 = vmatpush1.msra.mxu0 0.0
    %131 = vmatprep.subr.mxu0 0.0
    %132 = vmatpush1.msra.mxu0 0.0
    %133 = vmatprep.subr.mxu0 0.0
    %134 = vmatpush1.msra.mxu0 0.0
    %135 = vmatprep.subr.mxu0 0.0
    %136 = vmatpush1.msra.mxu0 0.0
    %137 = vmatprep.subr.mxu0 0.0
    %138 = vmatpush1.msra.mxu0 0.0
    %139 = vmatprep.subr.mxu0 0.0
    %140 = vmatpush1.msra.mxu0 0.0
    %141 = vmatprep.subr.mxu0 0.0
    %142 = vmatpush1.msra.mxu0 0.0
    %143 = vmatprep.subr.mxu0 0.0
    %144 = vmatpush1.msra.mxu0 0.0
    %145 = vmatprep.subr.mxu0 0.0
    %146 = vmatpush1.msra.mxu0 0.0
    %147 = vmatprep.subr.mxu0 0.0
    %148 = vmatpush1.msra.mxu0 0.0
    %149 = vmatprep.subr.mxu0 0.0
    %150 = vmatpush1.msra.mxu0 0.0
    %151 = vmatprep.subr.mxu0 0.0
    %152 = vmatpush1.msra.mxu0 0.0
    %153 = vmatprep.subr.mxu0 0.0
    %154 = vmatpush1.msra.mxu0 0.0
    %155 = vmatprep.subr.mxu0 0.0
    %156 = vmatpush1.msra.mxu0 0.0
    %157 = vmatprep.subr.mxu0 0.0
    %158 = vmatpush1.msra.mxu0 0.0
    %159 = vmatprep.subr.mxu0 0.0
    %160 = vmatpush1.msra.mxu0 0.0
    %161 = vmatprep.subr.mxu0 0.0
    %162 = vmatpush1.msra.mxu0 0.0
    %163 = vmatprep.mubr.f32.mxu0 0.0
    %164 = vmatmul.mubr.f32.gmra.mrb[0].mxu0 %v93
    %v165 = vpop.f32.mrb[0].mxu0
    %v166 = vadd.f32 %v89, %v165
    %v167 = vpop.f32.mrb[0].mxu0
    %168 = vdwg.mxu0
    %v169 = vtanh.pop %v166
    %v170 = vld [vmem:[#allocation6] sm:$0xff]
    %v171 = vld [vmem:[#allocation6 + $0x8] sm:$0xff]
    %v172 = vld [vmem:[#allocation6 + $0x10] sm:$0xff]
    %v173 = vld [vmem:[#allocation6 + $0x18] sm:$0xff]
    %v174 = vld [vmem:[#allocation6 + $0x20] sm:$0xff]
    %v175 = vld [vmem:[#allocation6 + $0x28] sm:$0xff]
    %v176 = vld [vmem:[#allocation6 + $0x30] sm:$0xff]
    %v177 = vld [vmem:[#allocation6 + $0x38] sm:$0xff]
    %v178 = vld [vmem:[%s4] sm:$0x1]
    %v180 = vlaneseq
    %v181 = vshrl.u32 %v180, 7
    %v182 = vsub.s32 0, %v181
    %v183 = vrot.slane %v178, %v182
    %vm185 = vcmask 523264
    %v187 = vsel %vm185, %v169, 0
    %189 = vmatprep.subr.mxu0 0.0
    %190 = vmatpush1.msra.mxu0 %v170
    %191 = vmatprep.subr.mxu0 0.0
    %192 = vmatpush1.msra.mxu0 %v171
    %193 = vmatprep.subr.mxu0 0.0
    %194 = vmatpush1.msra.mxu0 %v172
    %195 = vmatprep.subr.mxu0 0.0
    %196 = vmatpush1.msra.mxu0 %v173
    %197 = vmatprep.subr.mxu0 0.0
    %198 = vmatpush1.msra.mxu0 %v174
    %199 = vmatprep.subr.mxu0 0.0
    %200 = vmatpush1.msra.mxu0 %v175
    %201 = vmatprep.subr.mxu0 0.0
    %202 = vmatpush1.msra.mxu0 %v176
    %203 = vmatprep.subr.mxu0 0.0
    %204 = vmatpush1.msra.mxu0 %v177
    %205 = vmatprep.subr.mxu0 0.0
    %206 = vmatpush1.msra.mxu0 0.0
    %207 = vmatprep.subr.mxu0 0.0
    %208 = vmatpush1.msra.mxu0 0.0
    %209 = vmatprep.subr.mxu0 0.0
    %210 = vmatpush1.msra.mxu0 0.0
    %211 = vmatprep.subr.mxu0 0.0
    %212 = vmatpush1.msra.mxu0 0.0
    %213 = vmatprep.subr.mxu0 0.0
    %214 = vmatpush1.msra.mxu0 0.0
    %215 = vmatprep.subr.mxu0 0.0
    %216 = vmatpush1.msra.mxu0 0.0
    %217 = vmatprep.subr.mxu0 0.0
    %218 = vmatpush1.msra.mxu0 0.0
    %219 = vmatprep.subr.mxu0 0.0
    %220 = vmatpush1.msra.mxu0 0.0
    %221 = vmatprep.subr.mxu0 0.0
    %222 = vmatpush1.msra.mxu0 0.0
    %223 = vmatprep.subr.mxu0 0.0
    %224 = vmatpush1.msra.mxu0 0.0
    %225 = vmatprep.subr.mxu0 0.0
    %226 = vmatpush1.msra.mxu0 0.0
    %227 = vmatprep.subr.mxu0 0.0
    %228 = vmatpush1.msra.mxu0 0.0
    %229 = vmatprep.subr.mxu0 0.0
    %230 = vmatpush1.msra.mxu0 0.0
    %231 = vmatprep.subr.mxu0 0.0
    %232 = vmatpush1.msra.mxu0 0.0
    %233 = vmatprep.subr.mxu0 0.0
    %234 = vmatpush1.msra.mxu0 0.0
    %235 = vmatprep.subr.mxu0 0.0
    %236 = vmatpush1.msra.mxu0 0.0
    %237 = vmatprep.subr.mxu0 0.0
    %238 = vmatpush1.msra.mxu0 0.0
    %239 = vmatprep.subr.mxu0 0.0
    %240 = vmatpush1.msra.mxu0 0.0
    %241 = vmatprep.subr.mxu0 0.0
    %242 = vmatpush1.msra.mxu0 0.0
    %243 = vmatprep.subr.mxu0 0.0
    %244 = vmatpush1.msra.mxu0 0.0
    %245 = vmatprep.subr.mxu0 0.0
    %246 = vmatpush1.msra.mxu0 0.0
    %247 = vmatprep.subr.mxu0 0.0
    %248 = vmatpush1.msra.mxu0 0.0
    %249 = vmatprep.subr.mxu0 0.0
    %250 = vmatpush1.msra.mxu0 0.0
    %251 = vmatprep.subr.mxu0 0.0
    %252 = vmatpush1.msra.mxu0 0.0
    %253 = vmatprep.mubr.f32.mxu0 0.0
    %254 = vmatmul.mubr.f32.gmra.mrb[0].mxu0 %v187
    %v255 = vpop.f32.mrb[0].mxu0
    %v256 = vadd.f32 %v183, %v255
    %v257 = vpop.f32.mrb[0].mxu0
    %258 = vdwg.mxu0
    %v259 = vtanh.pop %v256
    %v260 = vld [vmem:[#allocation7] sm:$0xff]
    %v261 = vld [vmem:[#allocation7 + $0x8] sm:$0xff]
    %v262 = vld [vmem:[#allocation7 + $0x10] sm:$0xff]
    %v263 = vld [vmem:[#allocation7 + $0x18] sm:$0xff]
    %v264 = vld [vmem:[#allocation7 + $0x20] sm:$0xff]
    %v265 = vld [vmem:[#allocation7 + $0x28] sm:$0xff]
    %v266 = vld [vmem:[#allocation7 + $0x30] sm:$0xff]
    %v267 = vld [vmem:[#allocation7 + $0x38] sm:$0xff]
    %v268 = vld [vmem:[#allocation7 + $0x40] sm:$0xff]
    %v269 = vld [vmem:[#allocation7 + $0x48] sm:$0xff]
    %v270 = vld [vmem:[#allocation7 + $0x50] sm:$0xff]
    %v271 = vld [vmem:[#allocation7 + $0x58] sm:$0xff]
    %v272 = vld [vmem:[#allocation7 + $0x60] sm:$0xff]
    %v273 = vld [vmem:[#allocation7 + $0x68] sm:$0xff]
    %v274 = vld [vmem:[#allocation7 + $0x70] sm:$0xff]
    %v275 = vld [vmem:[#allocation7 + $0x78] sm:$0xff]
    %v276 = vld [vmem:[%s6] sm:$0x1]
    %v278 = vlaneseq
    %v279 = vshrl.u32 %v278, 7
    %v280 = vsub.s32 0, %v279
    %v281 = vrot.slane %v276, %v280
    %283 = vmatprep.subr.mxu0 0.0
    %284 = vmatpush1.msra.mxu0 %v260
    %285 = vmatprep.subr.mxu0 0.0
    %286 = vmatpush1.msra.mxu0 %v261
    %287 = vmatprep.subr.mxu0 0.0
    %288 = vmatpush1.msra.mxu0 %v262
    %289 = vmatprep.subr.mxu0 0.0
    %290 = vmatpush1.msra.mxu0 %v263
    %291 = vmatprep.subr.mxu0 0.0
    %292 = vmatpush1.msra.mxu0 %v264
    %293 = vmatprep.subr.mxu0 0.0
    %294 = vmatpush1.msra.mxu0 %v265
    %295 = vmatprep.subr.mxu0 0.0
    %296 = vmatpush1.msra.mxu0 %v266
    %297 = vmatprep.subr.mxu0 0.0
    %298 = vmatpush1.msra.mxu0 %v267
    %299 = vmatprep.subr.mxu0 0.0
    %300 = vmatpush1.msra.mxu0 %v268
    %301 = vmatprep.subr.mxu0 0.0
    %302 = vmatpush1.msra.mxu0 %v269
    %303 = vmatprep.subr.mxu0 0.0
    %304 = vmatpush1.msra.mxu0 %v270
    %305 = vmatprep.subr.mxu0 0.0
    %306 = vmatpush1.msra.mxu0 %v271
    %307 = vmatprep.subr.mxu0 0.0
    %308 = vmatpush1.msra.mxu0 %v272
    %309 = vmatprep.subr.mxu0 0.0
    %310 = vmatpush1.msra.mxu0 %v273
    %311 = vmatprep.subr.mxu0 0.0
    %312 = vmatpush1.msra.mxu0 %v274
    %313 = vmatprep.subr.mxu0 0.0
    %314 = vmatpush1.msra.mxu0 %v275
    %315 = vmatprep.subr.mxu0 0.0
    %316 = vmatpush1.msra.mxu0 0.0
    %317 = vmatprep.subr.mxu0 0.0
    %318 = vmatpush1.msra.mxu0 0.0
    %319 = vmatprep.subr.mxu0 0.0
    %320 = vmatpush1.msra.mxu0 0.0
    %321 = vmatprep.subr.mxu0 0.0
    %322 = vmatpush1.msra.mxu0 0.0
    %323 = vmatprep.subr.mxu0 0.0
    %324 = vmatpush1.msra.mxu0 0.0
    %325 = vmatprep.subr.mxu0 0.0
    %326 = vmatpush1.msra.mxu0 0.0
    %327 = vmatprep.subr.mxu0 0.0
    %328 = vmatpush1.msra.mxu0 0.0
    %329 = vmatprep.subr.mxu0 0.0
    %330 = vmatpush1.msra.mxu0 0.0
    %331 = vmatprep.subr.mxu0 0.0
    %332 = vmatpush1.msra.mxu0 0.0
    %333 = vmatprep.subr.mxu0 0.0
    %334 = vmatpush1.msra.mxu0 0.0
    %335 = vmatprep.subr.mxu0 0.0
    %336 = vmatpush1.msra.mxu0 0.0
    %337 = vmatprep.subr.mxu0 0.0
    %338 = vmatpush1.msra.mxu0 0.0
    %339 = vmatprep.subr.mxu0 0.0
    %340 = vmatpush1.msra.mxu0 0.0
    %341 = vmatprep.subr.mxu0 0.0
    %342 = vmatpush1.msra.mxu0 0.0
    %343 = vmatprep.subr.mxu0 0.0
    %344 = vmatpush1.msra.mxu0 0.0
    %345 = vmatprep.subr.mxu0 0.0
    %346 = vmatpush1.msra.mxu0 0.0
    %347 = vmatprep.mubr.f32.mxu0 0.0
    %348 = vmatmul.mubr.f32.gmra.mrb[0].mxu0 %v259
    %v349 = vpop.f32.mrb[0].mxu0
    %v350 = vadd.f32 %v281, %v349
    %v351 = vpop.f32.mrb[0].mxu0
    %352 = vdwg.mxu0
    %353 = vst [vmem:[#allocation9] sm:$0xff] %v350
    // Predicated region
    $region46: #{diffeo_mnist_dconv_forward.1} parent=1 // pred_check
      _
    $region47: #{diffeo_mnist_dconv_forward.1} parent=1 // pred_check_branch
      %355 = sbr.rel (0) target = $region49
    $region48: #{diffeo_mnist_dconv_forward.1} parent=1 // pred_region
      // Predicated region
      $region50: #{diffeo_mnist_dconv_forward.1} parent=48 // pred_check
        _
      $region51: #{diffeo_mnist_dconv_forward.1} parent=48 // pred_check_branch
        %357 = sbr.rel (0) target = $region53
      $region52: #{diffeo_mnist_dconv_forward.1} parent=48 // pred_region
        // Predicated region
        $region54: #{diffeo_mnist_dconv_forward.1} parent=52 // pred_check
          _
        $region55: #{diffeo_mnist_dconv_forward.1} parent=52 // pred_check_branch
          %359 = sbr.rel target = $region57
        $region56: #{diffeo_mnist_dconv_forward.1} parent=52 // pred_region
          // Predicated region
          $region69: #{diffeo_mnist_dconv_forward.1} parent=56 // pred_check
            _
          $region70: #{diffeo_mnist_dconv_forward.1} parent=56 // pred_check_branch
            %374 = sbr.rel (0) target = $region72
          $region71: #{diffeo_mnist_dconv_forward.1} parent=56 // pred_region
            loop: start=0, step=1, limit=1
            $region73: #{diffeo_mnist_dconv_forward.1} parent=71 // loop_pre_header
              _
            $region74: #{diffeo_mnist_dconv_forward.1} parent=71 // loop_header
              %s377 = sphi 0, %s381
              %p378 = scmp.ge.s32.totalorder %s377, 1
              %s382 = sphi [#allocation9], [#allocation9]
              %s383 = sphi %s7, %s7
            $region75: #{diffeo_mnist_dconv_forward.1} parent=71 // loop_header_branch
              %380 = sbr.rel (%p378) target = $region79
            $region76: #{diffeo_mnist_dconv_forward.1} parent=71 // loop_body
              %v384 = vld [vmem:[%s382] sm:$0x3]
              %385 = vst [vmem:[%s383] sm:$0x3] %v384
            $region77: #{diffeo_mnist_dconv_forward.1} parent=71 // loop_footer
              %s381 = sadd.s32 1, %s377
            $region78: #{diffeo_mnist_dconv_forward.1} parent=71 // loop_footer_branch
              %376 = sbr.rel target = $region74
            $region79: #{diffeo_mnist_dconv_forward.1} parent=71 // loop_exit
              _
          $region72: #{diffeo_mnist_dconv_forward.1} parent=56 // pred_fallthru
            _
        $region57: #{diffeo_mnist_dconv_forward.1} parent=52 // pred_fallthru
          _
        // Predicated region
        $region58: #{diffeo_mnist_dconv_forward.1} parent=52 // pred_check
          _
        $region59: #{diffeo_mnist_dconv_forward.1} parent=52 // pred_check_branch
          %361 = sbr.rel (0) target = $region61
        $region60: #{diffeo_mnist_dconv_forward.1} parent=52 // pred_region
          loop: start=0, step=1, limit=1
          $region62: #{diffeo_mnist_dconv_forward.1} parent=60 // loop_pre_header
            _
          $region63: #{diffeo_mnist_dconv_forward.1} parent=60 // loop_header
            %s364 = sphi 0, %s368
            %p365 = scmp.ge.s32.totalorder %s364, 1
            %s369 = sphi [#allocation9], [#allocation9]
            %s370 = sphi %s7, %s7
          $region64: #{diffeo_mnist_dconv_forward.1} parent=60 // loop_header_branch
            %367 = sbr.rel (%p365) target = $region68
          $region65: #{diffeo_mnist_dconv_forward.1} parent=60 // loop_body
            %v371 = vld [vmem:[%s369] sm:$0x3]
            %372 = vst [vmem:[%s370] sm:$0x3] %v371
          $region66: #{diffeo_mnist_dconv_forward.1} parent=60 // loop_footer
            %s368 = sadd.s32 1, %s364
          $region67: #{diffeo_mnist_dconv_forward.1} parent=60 // loop_footer_branch
            %363 = sbr.rel target = $region63
          $region68: #{diffeo_mnist_dconv_forward.1} parent=60 // loop_exit
            _
        $region61: #{diffeo_mnist_dconv_forward.1} parent=52 // pred_fallthru
          _
      $region53: #{diffeo_mnist_dconv_forward.1} parent=48 // pred_fallthru
        _
      %386 = vnop
    $region49: #{diffeo_mnist_dconv_forward.1} parent=1 // pred_fallthru
      _
    // Predicated region
    $region80: #{diffeo_mnist_dconv_forward.1} parent=1 // pred_check
      _
    $region81: #{diffeo_mnist_dconv_forward.1} parent=1 // pred_check_branch
      %388 = sbr.rel (0) target = $region83
    $region82: #{diffeo_mnist_dconv_forward.1} parent=1 // pred_region
      _
    $region83: #{diffeo_mnist_dconv_forward.1} parent=1 // pred_fallthru
      _
    %389 = vsyncpa [#allocation3], 1
    %390 = vsyncpa [#allocation5], 1
    %391 = vsyncpa [#allocation8], 1

</llo_original>
